<compile_context>
chip_gen: v7x
topology: tpu7x:2x2x1
jax: 0.10.0
libtpu: 0.0.40
codegen_flags: <defaults>
</compile_context>

<pallas_src>
import jax
import jax.numpy as jnp
from jax.experimental import pallas as pl
from jax.experimental.pallas import tpu as pltpu


def _round_up(x, m):
    return ((x + m - 1) // m) * m


def _choose_tile(batch, block_b):
    """Pick a batch tile (multiple of 16 for bf16 sublane packing) and padded batch.
    Prefer >= 2 grid steps so the parallel axis can shard across v7x's two TCs."""
    b16 = _round_up(batch, 16)
    if b16 <= 16:
        return 16, 16
    tb = min(block_b, _round_up(pl.cdiv(b16, 2), 16))
    b_pad = _round_up(b16, tb)
    return tb, b_pad


# ----------------------------------------------------------------------------
# Pallas kernel: full classifier head on one batch tile.
#   x_ref:   (TB, H)    bf16   CLS rows
#   w1_ref:  (H, 512)   bf16
#   w2_ref:  (512, 256) bf16
#   wd_ref:  (256, 128) bf16   lanes 0:4 = [wh0-wh1, wh1-wh0, wf0-wf1, wf1-wf0], rest 0
#   b_ref:   (1, 896)   f32    [b1 (512) | b2 (256) | head bias diffs (128, lanes 0:4)]
#   out_ref: (TB, 128)  f32    lanes 0:2 = hate probs, 2:4 = fake probs, rest zero
# ----------------------------------------------------------------------------
def head_kernel(x_ref, w1_ref, w2_ref, wd_ref, b_ref, out_ref):
    x = x_ref[...]                                     # (TB, H) bf16

    b1 = b_ref[:, 0:512]                               # (1, 512) f32
    b2 = b_ref[:, 512:768]                             # (1, 256) f32
    bd = b_ref[:, 768:896]                             # (1, 128) f32

    # dense1 + ReLU   (H -> 512), f32 accumulate, bf16 for the next MXU pass
    h1 = jnp.dot(x, w1_ref[...], preferred_element_type=jnp.float32) + b1
    h1 = jnp.maximum(h1, 0.0).astype(jnp.bfloat16)

    # dense2 + ReLU   (512 -> 256)
    h2 = jnp.dot(h1, w2_ref[...], preferred_element_type=jnp.float32) + b2
    h2 = jnp.maximum(h2, 0.0).astype(jnp.bfloat16)

    # fused head logit DIFFERENCES: 2-class softmax == sigmoid(l0 - l1), so the
    # subtraction is baked into the weight columns and the epilogue is just a
    # sigmoid (exp + reciprocal on the EUP) plus a lane mask.
    d = jnp.dot(h2, wd_ref[...], preferred_element_type=jnp.float32) + bd   # (TB, 128)
    probs = pl.reciprocal(1.0 + jnp.exp(-d), approx=False)

    # (1, 128) lane mask broadcasts over the batch tile (no (TB,128) iota temps)
    lane = jax.lax.broadcasted_iota(jnp.int32, (1, 128), 1)
    out_ref[...] = jnp.where(lane < 4, probs, 0.0).astype(out_ref.dtype)


def classifier_head(cls_bh, head_params, *, block_b):
    """cls_bh: (B_pad, H) bf16 CLS rows.  Returns lane-padded probs (B_pad, 128) f32."""
    B_pad, H = cls_bh.shape
    assert B_pad % block_b == 0
    n_blocks = B_pad // block_b

    in_specs = [
        pl.BlockSpec((block_b, H), lambda i: (i, 0)),
        # weights: same block index every step -> stay resident in VMEM
        pl.BlockSpec((H, 512), lambda i: (0, 0)),
        pl.BlockSpec((512, 256), lambda i: (0, 0)),
        pl.BlockSpec((256, 128), lambda i: (0, 0)),
        pl.BlockSpec((1, 896), lambda i: (0, 0)),
    ]
    out_specs = pl.BlockSpec((block_b, 128), lambda i: (i, 0))

    return pl.pallas_call(
        head_kernel,
        out_shape=jax.ShapeDtypeStruct((B_pad, 128), jnp.float32),
        grid=(n_blocks,),
        in_specs=in_specs,
        out_specs=out_specs,
        compiler_params=pltpu.CompilerParams(
            dimension_semantics=("parallel",)),
    )(cls_bh,
      head_params["w1"], head_params["w2"], head_params["wdiff"], head_params["b_all"])


# ----------------------------------------------------------------------------
# Parameter init / packing.
# ----------------------------------------------------------------------------
def init_params(key, hidden_size, vocab_size, seq_len):
    ks = jax.random.split(key, 12)
    scale = 0.02

    def norm(k, shape):
        return scale * jax.random.normal(k, shape, dtype=jnp.float32)

    return {
        # synthetic "BERT" stand-in
        "emb_table": norm(ks[0], (vocab_size, hidden_size)),
        "pos_table": norm(ks[1], (seq_len, hidden_size)),
        "w_bert":    norm(ks[2], (hidden_size, hidden_size)),
        "b_bert":    norm(ks[3], (1, hidden_size)),
        # classifier head, stored (in, out); biases (1, out)
        "w1": norm(ks[4], (hidden_size, 512)),
        "b1": norm(ks[5], (1, 512)),
        "w2": norm(ks[6], (512, 256)),
        "b2": norm(ks[7], (1, 256)),
        "wh": norm(ks[8], (256, 2)),
        "bh": norm(ks[9], (1, 2)),
        "wf": norm(ks[10], (256, 2)),
        "bf": norm(ks[11], (1, 2)),
    }


def prepare_head_params(params):
    """Pack weights for the kernel ONCE (outside the per-call forward path):
    bf16 matmul weights, fused lane-padded head *difference* columns, and a single
    concatenated f32 bias slab (128-aligned slices)."""
    w1 = params["w1"].astype(jnp.bfloat16)
    w2 = params["w2"].astype(jnp.bfloat16)

    wh, wf = params["wh"], params["wf"]        # (256, 2)
    bh, bf = params["bh"], params["bf"]        # (1, 2)

    # lanes 0..3 = [hate0-hate1, hate1-hate0, fake0-fake1, fake1-fake0]
    wdiff = jnp.zeros((256, 128), jnp.float32)
    wdiff = wdiff.at[:, 0].set(wh[:, 0] - wh[:, 1])
    wdiff = wdiff.at[:, 1].set(wh[:, 1] - wh[:, 0])
    wdiff = wdiff.at[:, 2].set(wf[:, 0] - wf[:, 1])
    wdiff = wdiff.at[:, 3].set(wf[:, 1] - wf[:, 0])
    wdiff = wdiff.astype(jnp.bfloat16)

    bdiff = jnp.zeros((1, 128), jnp.float32)
    bdiff = bdiff.at[0, 0].set(bh[0, 0] - bh[0, 1])
    bdiff = bdiff.at[0, 1].set(bh[0, 1] - bh[0, 0])
    bdiff = bdiff.at[0, 2].set(bf[0, 0] - bf[0, 1])
    bdiff = bdiff.at[0, 3].set(bf[0, 1] - bf[0, 0])

    b_all = jnp.concatenate([params["b1"], params["b2"], bdiff], axis=1)  # (1, 896)
    return {"w1": w1, "w2": w2, "wdiff": wdiff, "b_all": b_all}


# TODO(synk): the full pretrained BERT transformer encoder is an external module; it is
# replaced here by a deterministic embedding + tanh projection stand-in in plain JAX.
def synthetic_bert_last_hidden_state(input_ids, attention_mask, params):
    """Returns last_hidden_state laid out as (S, B, H) so the CLS token (s=0) is a
    contiguous (B, H) slab the wrapper can slice without touching the rest."""
    ids_t = input_ids.T                                        # (S, B)
    mask_t = attention_mask.T.astype(jnp.float32)              # (S, B)
    emb = params["emb_table"][ids_t]                           # (S, B, H)
    emb = emb + params["pos_table"][:, None, :]
    emb = emb * mask_t[..., None]
    hidden = jnp.tanh(emb @ params["w_bert"] + params["b_bert"][None])
    return hidden                                              # (S, B, H)


def multitask_forward(input_ids, attention_mask, params, head_params, *, block_b=1024):
    B = input_ids.shape[0]
    hidden = synthetic_bert_last_hidden_state(input_ids, attention_mask, params)  # (S,B,H) f32

    # CLS pooling in the wrapper: slice the contiguous s=0 slab BEFORE any cast/pad,
    # so only (B, H) — not (S, B, H) — is ever re-read/re-written.
    cls = hidden[0]                                            # (B, H)

    tb, b_pad = _choose_tile(B, block_b)
    cls_b = cls.astype(jnp.bfloat16)
    if b_pad != B:
        cls_b = jnp.pad(cls_b, ((0, b_pad - B), (0, 0)))

    probs = classifier_head(cls_b, head_params, block_b=tb)    # (b_pad, 128) f32
    hate = probs[:B, 0:2]
    fake = probs[:B, 2:4]
    return hate, fake


# ----------------------------------------------------------------------------
# Pure-JAX reference (f32) for the sanity check.
# ----------------------------------------------------------------------------
def reference_head(pooled, p):
    h1 = jax.nn.relu(pooled @ p["w1"] + p["b1"])
    h2 = jax.nn.relu(h1 @ p["w2"] + p["b2"])
    hate = jax.nn.softmax(h2 @ p["wh"] + p["bh"], axis=1)
    fake = jax.nn.softmax(h2 @ p["wf"] + p["bf"], axis=1)
    return hate, fake


if __name__ == "__main__":
    B, S, H, VOCAB = 2, 8, 32, 100

    key = jax.random.PRNGKey(0)
    k_param, k_ids = jax.random.split(key)
    params = init_params(k_param, hidden_size=H, vocab_size=VOCAB, seq_len=S)
    head_params = prepare_head_params(params)   # packed once, reused every call

    input_ids = jax.random.randint(k_ids, (B, S), 0, VOCAB, dtype=jnp.int32)
    attention_mask = jnp.ones((B, S), dtype=jnp.int32)

    hate_out, fake_out = multitask_forward(input_ids, attention_mask, params, head_params)
    hate_out = jax.block_until_ready(hate_out)
    fake_out = jax.block_until_ready(fake_out)

    # sanity check against f32 pure-JAX reference (bf16 matmul weights/activations
    # in the kernel -> relaxed tolerance)
    pooled = synthetic_bert_last_hidden_state(input_ids, attention_mask, params)[0]  # (B, H)
    ref_hate, ref_fake = reference_head(pooled, params)
    assert hate_out.shape == (B, 2) and fake_out.shape == (B, 2)
    assert jnp.allclose(hate_out, ref_hate, atol=2e-2, rtol=2e-2)
    assert jnp.allclose(fake_out, ref_fake, atol=2e-2, rtol=2e-2)
    assert jnp.allclose(jnp.sum(hate_out, axis=1), 1.0, atol=1e-2)
    assert jnp.allclose(jnp.sum(fake_out, axis=1), 1.0, atol=1e-2)

    print("KERNEL_OK")
</pallas_src>

<mosaic_0001>
module attributes {stable_mosaic.version = 11 : i64} {
  func.func @head_kernel(%arg0: i32, %arg1: memref<16x32xbf16, #tpu.memory_space<vmem>>, %arg2: memref<32x512xbf16, #tpu.memory_space<vmem>>, %arg3: memref<512x256xbf16, #tpu.memory_space<vmem>>, %arg4: memref<256x128xbf16, #tpu.memory_space<vmem>>, %arg5: memref<1x896xf32, #tpu.memory_space<vmem>>, %arg6: memref<16x128xf32, #tpu.memory_space<vmem>>) attributes {dimension_semantics = [#tpu.dimension_semantics<parallel>], iteration_bounds = array<i64: 1>, scalar_prefetch = 0 : i64, scratch_operands = 0 : i64, tpu.core_type = #tpu.core_type<tc>, window_params = [{transform_indices = @transform_0, window_bounds = array<i64: 16, 32>}, {pipeline_mode = #tpu.pipeline_mode<synchronous>, transform_indices = @transform_1, window_bounds = array<i64: 32, 512>}, {pipeline_mode = #tpu.pipeline_mode<synchronous>, transform_indices = @transform_2, window_bounds = array<i64: 512, 256>}, {pipeline_mode = #tpu.pipeline_mode<synchronous>, transform_indices = @transform_3, window_bounds = array<i64: 256, 128>}, {pipeline_mode = #tpu.pipeline_mode<synchronous>, transform_indices = @transform_4, window_bounds = array<i64: 1, 896>}, {transform_indices = @transform_5, window_bounds = array<i64: 16, 128>}]} {
    %c0 = arith.constant 0 : index
    %c0_0 = arith.constant 0 : index
    %0 = vector.load %arg1[%c0, %c0_0] : memref<16x32xbf16, #tpu.memory_space<vmem>>, vector<16x32xbf16>
    %c0_1 = arith.constant 0 : index
    %c0_2 = arith.constant 0 : index
    %1 = vector.load %arg5[%c0_1, %c0_2] : memref<1x896xf32, #tpu.memory_space<vmem>>, vector<1x512xf32>
    %c0_3 = arith.constant 0 : index
    %c512 = arith.constant 512 : index
    %2 = vector.load %arg5[%c0_3, %c512] : memref<1x896xf32, #tpu.memory_space<vmem>>, vector<1x256xf32>
    %c0_4 = arith.constant 0 : index
    %c768 = arith.constant 768 : index
    %3 = vector.load %arg5[%c0_4, %c768] : memref<1x896xf32, #tpu.memory_space<vmem>>, vector<1x128xf32>
    %c0_5 = arith.constant 0 : index
    %c0_6 = arith.constant 0 : index
    %4 = vector.load %arg2[%c0_5, %c0_6] : memref<32x512xbf16, #tpu.memory_space<vmem>>, vector<32x512xbf16>
    %cst = arith.constant dense<0.000000e+00> : vector<16x512xf32>
    %5 = tpu.matmul %0, %4, %cst {dimension_numbers = #tpu.dot_dimension_numbers<[1], [0], [0], [1], [0, 0, 1, 1], [], []>} : vector<16x32xbf16>, vector<32x512xbf16>, vector<16x512xf32> -> vector<16x512xf32>
    %6 = vector.broadcast %1 : vector<1x512xf32> to vector<16x512xf32>
    %7 = arith.addf %5, %6 : vector<16x512xf32>
    %cst_7 = arith.constant 0.000000e+00 : f32
    %8 = vector.broadcast %cst_7 : f32 to vector<16x512xf32>
    %9 = arith.maximumf %7, %8 : vector<16x512xf32>
    %10 = arith.truncf %9 : vector<16x512xf32> to vector<16x512xbf16>
    %c0_8 = arith.constant 0 : index
    %c0_9 = arith.constant 0 : index
    %11 = vector.load %arg3[%c0_8, %c0_9] : memref<512x256xbf16, #tpu.memory_space<vmem>>, vector<512x256xbf16>
    %cst_10 = arith.constant dense<0.000000e+00> : vector<16x256xf32>
    %12 = tpu.matmul %10, %11, %cst_10 {dimension_numbers = #tpu.dot_dimension_numbers<[1], [0], [0], [1], [0, 0, 1, 1], [], []>} : vector<16x512xbf16>, vector<512x256xbf16>, vector<16x256xf32> -> vector<16x256xf32>
    %13 = vector.broadcast %2 : vector<1x256xf32> to vector<16x256xf32>
    %14 = arith.addf %12, %13 : vector<16x256xf32>
    %cst_11 = arith.constant 0.000000e+00 : f32
    %15 = vector.broadcast %cst_11 : f32 to vector<16x256xf32>
    %16 = arith.maximumf %14, %15 : vector<16x256xf32>
    %17 = arith.truncf %16 : vector<16x256xf32> to vector<16x256xbf16>
    %c0_12 = arith.constant 0 : index
    %c0_13 = arith.constant 0 : index
    %18 = vector.load %arg4[%c0_12, %c0_13] : memref<256x128xbf16, #tpu.memory_space<vmem>>, vector<256x128xbf16>
    %cst_14 = arith.constant dense<0.000000e+00> : vector<16x128xf32>
    %19 = tpu.matmul %17, %18, %cst_14 {dimension_numbers = #tpu.dot_dimension_numbers<[1], [0], [0], [1], [0, 0, 1, 1], [], []>} : vector<16x256xbf16>, vector<256x128xbf16>, vector<16x128xf32> -> vector<16x128xf32>
    %20 = vector.broadcast %3 : vector<1x128xf32> to vector<16x128xf32>
    %21 = arith.addf %19, %20 : vector<16x128xf32>
    %cst_15 = arith.constant 0.000000e+00 : f32
    %22 = vector.broadcast %cst_15 : f32 to vector<16x128xf32>
    %23 = arith.subf %22, %21 : vector<16x128xf32>
    %24 = math.exp %23 : vector<16x128xf32>
    %cst_16 = arith.constant 1.000000e+00 : f32
    %25 = vector.broadcast %cst_16 : f32 to vector<16x128xf32>
    %26 = arith.addf %25, %24 : vector<16x128xf32>
    %27 = tpu.reciprocal %26 : vector<16x128xf32> -> vector<16x128xf32>
    %28 = tpu.iota {dimensions = array<i32: 1>} : vector<1x128xi32>
    %c4_i32 = arith.constant 4 : i32
    %29 = vector.broadcast %c4_i32 : i32 to vector<1x128xi32>
    %30 = arith.cmpi slt, %28, %29 : vector<1x128xi32>
    %cst_17 = arith.constant 0.000000e+00 : f32
    %31 = vector.shape_cast %30 : vector<1x128xi1> to vector<1x128xi1>
    %32 = vector.broadcast %31 : vector<1x128xi1> to vector<16x128xi1>
    %33 = vector.broadcast %cst_17 : f32 to vector<16x128xf32>
    %34 = arith.select %32, %27, %33 : vector<16x128xi1>, vector<16x128xf32>
    %c0_18 = arith.constant 0 : index
    %c0_19 = arith.constant 0 : index
    %35 = vector.load %arg6[%c0_18, %c0_19] : memref<16x128xf32, #tpu.memory_space<vmem>>, vector<16x128xf32>
    tpu.vector_store %arg6[%c0_18, %c0_19], %34 {strides = array<i32>} : memref<16x128xf32, #tpu.memory_space<vmem>>, vector<16x128xf32>,
    return
  }
  func.func @transform_0(%arg0: i32) -> (i32, i32) {
    %c0_i32 = arith.constant 0 : i32
    %c0_i32_0 = arith.constant 0 : i32
    return %arg0, %c0_i32 : i32, i32
  }
  func.func @transform_1(%arg0: i32) -> (i32, i32) {
    %c0_i32 = arith.constant 0 : i32
    %c0_i32_0 = arith.constant 0 : i32
    %c0_i32_1 = arith.constant 0 : i32
    return %c0_i32, %c0_i32_0 : i32, i32
  }
  func.func @transform_2(%arg0: i32) -> (i32, i32) {
    %c0_i32 = arith.constant 0 : i32
    %c0_i32_0 = arith.constant 0 : i32
    %c0_i32_1 = arith.constant 0 : i32
    return %c0_i32, %c0_i32_0 : i32, i32
  }
  func.func @transform_3(%arg0: i32) -> (i32, i32) {
    %c0_i32 = arith.constant 0 : i32
    %c0_i32_0 = arith.constant 0 : i32
    %c0_i32_1 = arith.constant 0 : i32
    return %c0_i32, %c0_i32_0 : i32, i32
  }
  func.func @transform_4(%arg0: i32) -> (i32, i32) {
    %c0_i32 = arith.constant 0 : i32
    %c0_i32_0 = arith.constant 0 : i32
    %c0_i32_1 = arith.constant 0 : i32
    return %c0_i32, %c0_i32_0 : i32, i32
  }
  func.func @transform_5(%arg0: i32) -> (i32, i32) {
    %c0_i32 = arith.constant 0 : i32
    %c0_i32_0 = arith.constant 0 : i32
    return %arg0, %c0_i32 : i32, i32
  }
}

</mosaic_0001>

<llo_original>
// kernel: tpu_custom_call.1
$region0: #{tpu_custom_call.1}
  #allocation0 [shape = 'u32[]', space=smem, size = 0x4, offset = 0x4, fixed_abs, tag = 'smem constant byte address 0x4 - core index']
  #allocation1 [shape = 'u32[144,128]{1,0:T(1,128)}', space=vmem, size = 0x12000, scoped, tag = 'internal scratch']
  %s0 = inlined_call_operand.hbm [shape: bf16[16,32], index: 0, kind: input, shape index: {}]
  %s1 = inlined_call_operand.hbm [shape: bf16[32,512], index: 1, kind: input, shape index: {}]
  %s2 = inlined_call_operand.hbm [shape: bf16[512,256], index: 2, kind: input, shape index: {}]
  %s3 = inlined_call_operand.hbm [shape: bf16[256,128], index: 3, kind: input, shape index: {}]
  %s4 = inlined_call_operand.vmem [shape: f32[1,896], index: 4, kind: input, shape index: {}]
  %s5 = inlined_call_operand.hbm [shape: f32[16,128], index: 5, kind: output, shape index: {}]
  %s6 = sld [smem:[#allocation0]]
  $region46: #{tpu_custom_call.1} parent=0
    _
  %s8 = ssub.s32 1, %s6
  %s9 = scalar_select 0, %s8, %s6
  $region1: #{tpu_custom_call.1} parent=0
    #allocation2 [shape = 'u8[4096]{0}', space=vmem, size = 0x1000, scoped, tag = 'input window, operand 0, single buffered']
    #allocation3 [shape = 's32[1]{0}', space=sflag, size = 0x4, scoped, tag = 'scoped memory for tpu_custom_call.1']
    #allocation4 [shape = 's32[1]{0}', space=sflag, size = 0x4, scoped, tag = 'scoped memory for tpu_custom_call.1']
    #allocation5 [shape = 'u8[32768]{0}', space=vmem, size = 0x8000, scoped, tag = 'input window, operand 1, single buffered']
    #allocation6 [shape = 's32[1]{0}', space=sflag, size = 0x4, scoped, tag = 'scoped memory for tpu_custom_call.1']
    #allocation7 [shape = 'u8[262144]{0}', space=vmem, size = 0x40000, scoped, tag = 'input window, operand 2, single buffered']
    #allocation8 [shape = 'u8[65536]{0}', space=vmem, size = 0x10000, scoped, tag = 'input window, operand 3, single buffered']
    #allocation9 [shape = 's32[1]{0}', space=sflag, size = 0x4, scoped, tag = 'scoped memory for tpu_custom_call.1']
    #allocation10 [shape = 'u8[8192]{0}', space=vmem, size = 0x2000, scoped, tag = 'output window, operand 0, single buffered']
    %10 = vsyncpa [#allocation3], 0
    %11 = vsyncpa [#allocation6], 0
    %12 = vsyncpa [#allocation9], 0
    %13 = vsyncpa [#allocation4], 0
    // Predicated region
    $region2: #{tpu_custom_call.1} parent=1 // pred_check
      _
    $region3: #{tpu_custom_call.1} parent=1 // pred_check_branch
      %15 = sbr.rel (0) target = $region5
    $region4: #{tpu_custom_call.1} parent=1 // pred_region
      %s17 = ssub.s32 128, 128
      %18 = vsyncadd [#allocation3], %s17
      %s19 = sshll.u32 [#allocation2], 4
      %s20 = int_to_ptr.vmem [resolvable:$true] %s19
      %25 = dma.hbm_to_vmem [thread:$0]  %s0, 128, %s20, [#allocation3], 64, 64, 4
    $region5: #{tpu_custom_call.1} parent=1 // pred_fallthru
      _
    // Predicated region
    $region6: #{tpu_custom_call.1} parent=1 // pred_check
      _
    $region7: #{tpu_custom_call.1} parent=1 // pred_check_branch
      %27 = sbr.rel (0) target = $region9
    $region8: #{tpu_custom_call.1} parent=1 // pred_region
      %s29 = ssub.s32 1024, 1024
      %30 = vsyncadd [#allocation6], %s29
      %s31 = sshll.u32 [#allocation5], 4
      %s32 = int_to_ptr.vmem [resolvable:$true] %s31
      %37 = dma.hbm_to_vmem [thread:$0]  %s1, 1024, %s32, [#allocation6], 256, 256, 16
    $region9: #{tpu_custom_call.1} parent=1 // pred_fallthru
      _
    // Predicated region
    $region10: #{tpu_custom_call.1} parent=1 // pred_check
      _
    $region11: #{tpu_custom_call.1} parent=1 // pred_check_branch
      %39 = sbr.rel (0) target = $region13
    $region12: #{tpu_custom_call.1} parent=1 // pred_region
      %s41 = ssub.s32 8192, 8192
      %42 = vsyncadd [#allocation6], %s41
      %s43 = sshll.u32 [#allocation7], 4
      %s44 = int_to_ptr.vmem [resolvable:$true] %s43
      %49 = dma.hbm_to_vmem [thread:$0]  %s2, 8192, %s44, [#allocation6], 128, 128, 8
    $region13: #{tpu_custom_call.1} parent=1 // pred_fallthru
      _
    // Predicated region
    $region14: #{tpu_custom_call.1} parent=1 // pred_check
      _
    $region15: #{tpu_custom_call.1} parent=1 // pred_check_branch
      %51 = sbr.rel (0) target = $region17
    $region16: #{tpu_custom_call.1} parent=1 // pred_region
      %s53 = ssub.s32 2048, 2048
      %54 = vsyncadd [#allocation9], %s53
      %s55 = sshll.u32 [#allocation8], 4
      %s56 = int_to_ptr.vmem [resolvable:$true] %s55
      %61 = dma.hbm_to_vmem [thread:$0]  %s3, 2048, %s56, [#allocation9], 64, 64, 4
    $region17: #{tpu_custom_call.1} parent=1 // pred_fallthru
      _
    // Predicated region
    $region18: #{tpu_custom_call.1} parent=1 // pred_check
      _
    $region19: #{tpu_custom_call.1} parent=1 // pred_check_branch
      %63 = sbr.rel (0) target = $region21
    $region20: #{tpu_custom_call.1} parent=1 // pred_region
      _
    $region21: #{tpu_custom_call.1} parent=1 // pred_fallthru
      _
    // Predicated region
    $region22: #{tpu_custom_call.1} parent=1 // pred_check
      _
    $region23: #{tpu_custom_call.1} parent=1 // pred_check_branch
      %65 = sbr.rel (0) target = $region25
    $region24: #{tpu_custom_call.1} parent=1 // pred_region
      %66 = dma.done [#allocation3], 128
    $region25: #{tpu_custom_call.1} parent=1 // pred_fallthru
      _
    // Predicated region
    $region26: #{tpu_custom_call.1} parent=1 // pred_check
      _
    $region27: #{tpu_custom_call.1} parent=1 // pred_check_branch
      %68 = sbr.rel (0) target = $region29
    $region28: #{tpu_custom_call.1} parent=1 // pred_region
      %69 = dma.done [#allocation6], 1024
    $region29: #{tpu_custom_call.1} parent=1 // pred_fallthru
      _
    // Predicated region
    $region30: #{tpu_custom_call.1} parent=1 // pred_check
      _
    $region31: #{tpu_custom_call.1} parent=1 // pred_check_branch
      %71 = sbr.rel (0) target = $region33
    $region32: #{tpu_custom_call.1} parent=1 // pred_region
      %72 = dma.done [#allocation6], 8192
    $region33: #{tpu_custom_call.1} parent=1 // pred_fallthru
      _
    // Predicated region
    $region34: #{tpu_custom_call.1} parent=1 // pred_check
      _
    $region35: #{tpu_custom_call.1} parent=1 // pred_check_branch
      %74 = sbr.rel (0) target = $region37
    $region36: #{tpu_custom_call.1} parent=1 // pred_region
      %75 = dma.done [#allocation9], 2048
    $region37: #{tpu_custom_call.1} parent=1 // pred_fallthru
      _
    %v77 = vld [vmem:[#allocation2] sm:$0xf]
    %v78 = vld [vmem:[#allocation2 + $0x4] sm:$0xf]
    %v79 = vld [vmem:[%s4] sm:$0xf]
    %v80 = vld [vmem:[%s4 + $0x4] sm:$0x3]
    %v81 = vld [vmem:[%s4 + $0x6] sm:$0x1]
    %v82 = vld [vmem:[#allocation5] sm:$0xff]
    %v83 = vld [vmem:[#allocation5 + $0x8] sm:$0xff]
    %v84 = vld [vmem:[#allocation5 + $0x10] sm:$0xff]
    %v85 = vld [vmem:[#allocation5 + $0x18] sm:$0xff]
    %v86 = vld [vmem:[#allocation5 + $0x20] sm:$0xff]
    %v87 = vld [vmem:[#allocation5 + $0x28] sm:$0xff]
    %v88 = vld [vmem:[#allocation5 + $0x30] sm:$0xff]
    %v89 = vld [vmem:[#allocation5 + $0x38] sm:$0xff]
    %v91 = vlaneseq
    %v92 = vshrl.u32 %v91, 7
    %v93 = vsub.s32 0, %v92
    %v94 = vrot.slane %v79, %v93
    %v95 = vlaneseq
    %v96 = vshrl.u32 %v95, 7
    %v97 = vsub.s32 1, %v96
    %v98 = vrot.slane %v79, %v97
    %v99 = vlaneseq
    %v100 = vshrl.u32 %v99, 7
    %v101 = vsub.s32 2, %v100
    %v102 = vrot.slane %v79, %v101
    %v103 = vlaneseq
    %v104 = vshrl.u32 %v103, 7
    %v105 = vsub.s32 3, %v104
    %v106 = vrot.slane %v79, %v105
    %v113 = vunpack.c.l.b16 %v77
    %v114 = vunpack.c.l.b16 %v78
    %v115 = vpack.c.b16 %v114, %v113
    %v124 = vunpack.c.l.b16 %v82
    %v125 = vunpack.c.h.b16 %v82
    %v126 = vunpack.c.l.b16 %v83
    %v127 = vunpack.c.h.b16 %v83
    %v128 = vunpack.c.l.b16 %v84
    %v129 = vunpack.c.h.b16 %v84
    %v130 = vunpack.c.l.b16 %v85
    %v131 = vunpack.c.h.b16 %v85
    %v132 = vunpack.c.l.b16 %v86
    %v133 = vunpack.c.h.b16 %v86
    %v134 = vunpack.c.l.b16 %v87
    %v135 = vunpack.c.h.b16 %v87
    %v136 = vunpack.c.l.b16 %v88
    %v137 = vunpack.c.h.b16 %v88
    %v138 = vunpack.c.l.b16 %v89
    %v139 = vunpack.c.h.b16 %v89
    %v140 = vpack.c.b16 %v128, %v124
    %v141 = vpack.c.b16 %v129, %v125
    %v142 = vpack.c.b16 %v130, %v126
    %v143 = vpack.c.b16 %v131, %v127
    %v144 = vpack.c.b16 %v136, %v132
    %v145 = vpack.c.b16 %v137, %v133
    %v146 = vpack.c.b16 %v138, %v134
    %v147 = vpack.c.b16 %v139, %v135
    %vm156 = vcmask 261120
    %v158 = vsel %vm156, %v115, 0
    %160 = vmatprep.subr.bf16.mxu0 %v141
    %161 = vmatpush1.bf16.msra.mxu0 %v140
    %162 = vmatprep.subr.bf16.mxu0 %v145
    %163 = vmatpush1.bf16.msra.mxu0 %v144
    %164 = vmatprep.subr.bf16.mxu0 0
    %165 = vmatpush1.bf16.msra.mxu0 0
    %166 = vmatprep.subr.bf16.mxu0 0
    %167 = vmatpush1.bf16.msra.mxu0 0
    %168 = vmatprep.subr.bf16.mxu0 0
    %169 = vmatpush1.bf16.msra.mxu0 0
    %170 = vmatprep.subr.bf16.mxu0 0
    %171 = vmatpush1.bf16.msra.mxu0 0
    %172 = vmatprep.subr.bf16.mxu0 0
    %173 = vmatpush1.bf16.msra.mxu0 0
    %174 = vmatprep.subr.bf16.mxu0 0
    %175 = vmatpush1.bf16.msra.mxu0 0
    %176 = vmatprep.subr.bf16.mxu0 0
    %177 = vmatpush1.bf16.msra.mxu0 0
    %178 = vmatprep.subr.bf16.mxu0 0
    %179 = vmatpush1.bf16.msra.mxu0 0
    %180 = vmatprep.subr.bf16.mxu0 0
    %181 = vmatpush1.bf16.msra.mxu0 0
    %182 = vmatprep.subr.bf16.mxu0 0
    %183 = vmatpush1.bf16.msra.mxu0 0
    %184 = vmatprep.subr.bf16.mxu0 0
    %185 = vmatpush1.bf16.msra.mxu0 0
    %186 = vmatprep.subr.bf16.mxu0 0
    %187 = vmatpush1.bf16.msra.mxu0 0
    %188 = vmatprep.subr.bf16.mxu0 0
    %189 = vmatpush1.bf16.msra.mxu0 0
    %190 = vmatprep.subr.bf16.mxu0 0
    %191 = vmatpush1.bf16.msra.mxu0 0
    %192 = vmatprep.mubr.bf16.mxu0 0
    %193 = vmatmul.mubr.bf16.gmra.mrb[0].mxu0 %v158
    %v194 = vpop.f32.mrb[0].mxu0
    %v195 = vadd.f32 %v94, %v194
    %v196 = vpop.f32.mrb[0].mxu0
    %v197 = vadd.f32 %v98, %v196
    %v198 = vpop.f32.mrb[0].mxu0
    %v199 = vadd.f32 %v94, %v198
    %v200 = vpop.f32.mrb[0].mxu0
    %v201 = vadd.f32 %v98, %v200
    %202 = vdwg.mxu0
    %203 = vmatprep.subr.bf16.mxu0 %v143
    %204 = vmatpush1.bf16.msra.mxu0 %v142
    %205 = vmatprep.subr.bf16.mxu0 %v147
    %206 = vmatpush1.bf16.msra.mxu0 %v146
    %207 = vmatprep.subr.bf16.mxu0 0
    %208 = vmatpush1.bf16.msra.mxu0 0
    %209 = vmatprep.subr.bf16.mxu0 0
    %210 = vmatpush1.bf16.msra.mxu0 0
    %211 = vmatprep.subr.bf16.mxu0 0
    %212 = vmatpush1.bf16.msra.mxu0 0
    %213 = vmatprep.subr.bf16.mxu0 0
    %214 = vmatpush1.bf16.msra.mxu0 0
    %215 = vmatprep.subr.bf16.mxu0 0
    %216 = vmatpush1.bf16.msra.mxu0 0
    %217 = vmatprep.subr.bf16.mxu0 0
    %218 = vmatpush1.bf16.msra.mxu0 0
    %219 = vmatprep.subr.bf16.mxu0 0
    %220 = vmatpush1.bf16.msra.mxu0 0
    %221 = vmatprep.subr.bf16.mxu0 0
    %222 = vmatpush1.bf16.msra.mxu0 0
    %223 = vmatprep.subr.bf16.mxu0 0
    %224 = vmatpush1.bf16.msra.mxu0 0
    %225 = vmatprep.subr.bf16.mxu0 0
    %226 = vmatpush1.bf16.msra.mxu0 0
    %227 = vmatprep.subr.bf16.mxu0 0
    %228 = vmatpush1.bf16.msra.mxu0 0
    %229 = vmatprep.subr.bf16.mxu0 0
    %230 = vmatpush1.bf16.msra.mxu0 0
    %231 = vmatprep.subr.bf16.mxu0 0
    %232 = vmatpush1.bf16.msra.mxu0 0
    %233 = vmatprep.subr.bf16.mxu0 0
    %234 = vmatpush1.bf16.msra.mxu0 0
    %235 = vmatprep.mubr.bf16.mxu0 0
    %236 = vmatmul.mubr.bf16.gmra.mrb[0].mxu0 %v158
    %v237 = vpop.f32.mrb[0].mxu0
    %v238 = vadd.f32 %v102, %v237
    %v239 = vpop.f32.mrb[0].mxu0
    %v240 = vadd.f32 %v106, %v239
    %v241 = vpop.f32.mrb[0].mxu0
    %v242 = vadd.f32 %v102, %v241
    %v243 = vpop.f32.mrb[0].mxu0
    %v244 = vadd.f32 %v106, %v243
    %245 = vdwg.mxu0
    %v246 = vmax.f32 %v195, 0.0
    %v247 = vmax.f32 %v197, 0.0
    %v248 = vmax.f32 %v238, 0.0
    %v249 = vmax.f32 %v240, 0.0
    %v250 = vmax.f32 %v199, 0.0
    %v251 = vmax.f32 %v201, 0.0
    %v252 = vmax.f32 %v242, 0.0
    %v253 = vmax.f32 %v244, 0.0
    %v254 = vpack.c.bf16 %v250, %v246
    %v255 = vpack.c.bf16 %v251, %v247
    %v256 = vpack.c.bf16 %v252, %v248
    %v257 = vpack.c.bf16 %v253, %v249
    %v258 = vld [vmem:[#allocation7] sm:$0xff]
    %v259 = vld [vmem:[#allocation7 + $0x8] sm:$0xff]
    %v260 = vld [vmem:[#allocation7 + $0x10] sm:$0xff]
    %v261 = vld [vmem:[#allocation7 + $0x18] sm:$0xff]
    %v262 = vld [vmem:[#allocation7 + $0x20] sm:$0xff]
    %v263 = vld [vmem:[#allocation7 + $0x28] sm:$0xff]
    %v264 = vld [vmem:[#allocation7 + $0x30] sm:$0xff]
    %v265 = vld [vmem:[#allocation7 + $0x38] sm:$0xff]
    %v266 = vld [vmem:[#allocation7 + $0x40] sm:$0xff]
    %v267 = vld [vmem:[#allocation7 + $0x48] sm:$0xff]
    %v268 = vld [vmem:[#allocation7 + $0x50] sm:$0xff]
    %v269 = vld [vmem:[#allocation7 + $0x58] sm:$0xff]
    %v270 = vld [vmem:[#allocation7 + $0x60] sm:$0xff]
    %v271 = vld [vmem:[#allocation7 + $0x68] sm:$0xff]
    %v272 = vld [vmem:[#allocation7 + $0x70] sm:$0xff]
    %v273 = vld [vmem:[#allocation7 + $0x78] sm:$0xff]
    %v274 = vld [vmem:[#allocation7 + $0x80] sm:$0xff]
    %v275 = vld [vmem:[#allocation7 + $0x88] sm:$0xff]
    %v276 = vld [vmem:[#allocation7 + $0x90] sm:$0xff]
    %v277 = vld [vmem:[#allocation7 + $0x98] sm:$0xff]
    %v278 = vld [vmem:[#allocation7 + $0xa0] sm:$0xff]
    %v279 = vld [vmem:[#allocation7 + $0xa8] sm:$0xff]
    %v280 = vld [vmem:[#allocation7 + $0xb0] sm:$0xff]
    %v281 = vld [vmem:[#allocation7 + $0xb8] sm:$0xff]
    %v282 = vld [vmem:[#allocation7 + $0xc0] sm:$0xff]
    %v283 = vld [vmem:[#allocation7 + $0xc8] sm:$0xff]
    %v284 = vld [vmem:[#allocation7 + $0xd0] sm:$0xff]
    %v285 = vld [vmem:[#allocation7 + $0xd8] sm:$0xff]
    %v286 = vld [vmem:[#allocation7 + $0xe0] sm:$0xff]
    %v287 = vld [vmem:[#allocation7 + $0xe8] sm:$0xff]
    %v288 = vld [vmem:[#allocation7 + $0xf0] sm:$0xff]
    %v289 = vld [vmem:[#allocation7 + $0xf8] sm:$0xff]
    %v290 = vld [vmem:[#allocation7 + $0x100] sm:$0xff]
    %v291 = vld [vmem:[#allocation7 + $0x108] sm:$0xff]
    %v292 = vld [vmem:[#allocation7 + $0x110] sm:$0xff]
    %v293 = vld [vmem:[#allocation7 + $0x118] sm:$0xff]
    %v294 = vld [vmem:[#allocation7 + $0x120] sm:$0xff]
    %v295 = vld [vmem:[#allocation7 + $0x128] sm:$0xff]
    %v296 = vld [vmem:[#allocation7 + $0x130] sm:$0xff]
    %v297 = vld [vmem:[#allocation7 + $0x138] sm:$0xff]
    %v298 = vld [vmem:[#allocation7 + $0x140] sm:$0xff]
    %v299 = vld [vmem:[#allocation7 + $0x148] sm:$0xff]
    %v300 = vld [vmem:[#allocation7 + $0x150] sm:$0xff]
    %v301 = vld [vmem:[#allocation7 + $0x158] sm:$0xff]
    %v302 = vld [vmem:[#allocation7 + $0x160] sm:$0xff]
    %v303 = vld [vmem:[#allocation7 + $0x168] sm:$0xff]
    %v304 = vld [vmem:[#allocation7 + $0x170] sm:$0xff]
    %v305 = vld [vmem:[#allocation7 + $0x178] sm:$0xff]
    %v306 = vld [vmem:[#allocation7 + $0x180] sm:$0xff]
    %v307 = vld [vmem:[#allocation7 + $0x188] sm:$0xff]
    %v308 = vld [vmem:[#allocation7 + $0x190] sm:$0xff]
    %v309 = vld [vmem:[#allocation7 + $0x198] sm:$0xff]
    %v310 = vld [vmem:[#allocation7 + $0x1a0] sm:$0xff]
    %v311 = vld [vmem:[#allocation7 + $0x1a8] sm:$0xff]
    %v312 = vld [vmem:[#allocation7 + $0x1b0] sm:$0xff]
    %v313 = vld [vmem:[#allocation7 + $0x1b8] sm:$0xff]
    %v314 = vld [vmem:[#allocation7 + $0x1c0] sm:$0xff]
    %v315 = vld [vmem:[#allocation7 + $0x1c8] sm:$0xff]
    %v316 = vld [vmem:[#allocation7 + $0x1d0] sm:$0xff]
    %v317 = vld [vmem:[#allocation7 + $0x1d8] sm:$0xff]
    %v318 = vld [vmem:[#allocation7 + $0x1e0] sm:$0xff]
    %v319 = vld [vmem:[#allocation7 + $0x1e8] sm:$0xff]
    %v320 = vld [vmem:[#allocation7 + $0x1f0] sm:$0xff]
    %v321 = vld [vmem:[#allocation7 + $0x1f8] sm:$0xff]
    %v323 = vlaneseq
    %v324 = vshrl.u32 %v323, 7
    %v325 = vsub.s32 0, %v324
    %v326 = vrot.slane %v80, %v325
    %v327 = vlaneseq
    %v328 = vshrl.u32 %v327, 7
    %v329 = vsub.s32 1, %v328
    %v330 = vrot.slane %v80, %v329
    %v397 = vunpack.c.l.b16 %v258
    %v398 = vunpack.c.h.b16 %v258
    %v399 = vunpack.c.l.b16 %v259
    %v400 = vunpack.c.h.b16 %v259
    %v401 = vunpack.c.l.b16 %v260
    %v402 = vunpack.c.h.b16 %v260
    %v403 = vunpack.c.l.b16 %v261
    %v404 = vunpack.c.h.b16 %v261
    %v405 = vunpack.c.l.b16 %v262
    %v406 = vunpack.c.h.b16 %v262
    %v407 = vunpack.c.l.b16 %v263
    %v408 = vunpack.c.h.b16 %v263
    %v409 = vunpack.c.l.b16 %v264
    %v410 = vunpack.c.h.b16 %v264
    %v411 = vunpack.c.l.b16 %v265
    %v412 = vunpack.c.h.b16 %v265
    %v413 = vunpack.c.l.b16 %v266
    %v414 = vunpack.c.h.b16 %v266
    %v415 = vunpack.c.l.b16 %v267
    %v416 = vunpack.c.h.b16 %v267
    %v417 = vunpack.c.l.b16 %v268
    %v418 = vunpack.c.h.b16 %v268
    %v419 = vunpack.c.l.b16 %v269
    %v420 = vunpack.c.h.b16 %v269
    %v421 = vunpack.c.l.b16 %v270
    %v422 = vunpack.c.h.b16 %v270
    %v423 = vunpack.c.l.b16 %v271
    %v424 = vunpack.c.h.b16 %v271
    %v425 = vunpack.c.l.b16 %v272
    %v426 = vunpack.c.h.b16 %v272
    %v427 = vunpack.c.l.b16 %v273
    %v428 = vunpack.c.h.b16 %v273
    %v429 = vunpack.c.l.b16 %v274
    %v430 = vunpack.c.h.b16 %v274
    %v431 = vunpack.c.l.b16 %v275
    %v432 = vunpack.c.h.b16 %v275
    %v433 = vunpack.c.l.b16 %v276
    %v434 = vunpack.c.h.b16 %v276
    %v435 = vunpack.c.l.b16 %v277
    %v436 = vunpack.c.h.b16 %v277
    %v437 = vunpack.c.l.b16 %v278
    %v438 = vunpack.c.h.b16 %v278
    %v439 = vunpack.c.l.b16 %v279
    %v440 = vunpack.c.h.b16 %v279
    %v441 = vunpack.c.l.b16 %v280
    %v442 = vunpack.c.h.b16 %v280
    %v443 = vunpack.c.l.b16 %v281
    %v444 = vunpack.c.h.b16 %v281
    %v445 = vunpack.c.l.b16 %v282
    %v446 = vunpack.c.h.b16 %v282
    %v447 = vunpack.c.l.b16 %v283
    %v448 = vunpack.c.h.b16 %v283
    %v449 = vunpack.c.l.b16 %v284
    %v450 = vunpack.c.h.b16 %v284
    %v451 = vunpack.c.l.b16 %v285
    %v452 = vunpack.c.h.b16 %v285
    %v453 = vunpack.c.l.b16 %v286
    %v454 = vunpack.c.h.b16 %v286
    %v455 = vunpack.c.l.b16 %v287
    %v456 = vunpack.c.h.b16 %v287
    %v457 = vunpack.c.l.b16 %v288
    %v458 = vunpack.c.h.b16 %v288
    %v459 = vunpack.c.l.b16 %v289
    %v460 = vunpack.c.h.b16 %v289
    %v461 = vunpack.c.l.b16 %v290
    %v462 = vunpack.c.h.b16 %v290
    %v463 = vunpack.c.l.b16 %v291
    %v464 = vunpack.c.h.b16 %v291
    %v465 = vunpack.c.l.b16 %v292
    %v466 = vunpack.c.h.b16 %v292
    %v467 = vunpack.c.l.b16 %v293
    %v468 = vunpack.c.h.b16 %v293
    %v469 = vunpack.c.l.b16 %v294
    %v470 = vunpack.c.h.b16 %v294
    %v471 = vunpack.c.l.b16 %v295
    %v472 = vunpack.c.h.b16 %v295
    %v473 = vunpack.c.l.b16 %v296
    %v474 = vunpack.c.h.b16 %v296
    %v475 = vunpack.c.l.b16 %v297
    %v476 = vunpack.c.h.b16 %v297
    %v477 = vunpack.c.l.b16 %v298
    %v478 = vunpack.c.h.b16 %v298
    %v479 = vunpack.c.l.b16 %v299
    %v480 = vunpack.c.h.b16 %v299
    %v481 = vunpack.c.l.b16 %v300
    %v482 = vunpack.c.h.b16 %v300
    %v483 = vunpack.c.l.b16 %v301
    %v484 = vunpack.c.h.b16 %v301
    %v485 = vunpack.c.l.b16 %v302
    %v486 = vunpack.c.h.b16 %v302
    %v487 = vunpack.c.l.b16 %v303
    %v488 = vunpack.c.h.b16 %v303
    %v489 = vunpack.c.l.b16 %v304
    %v490 = vunpack.c.h.b16 %v304
    %v491 = vunpack.c.l.b16 %v305
    %v492 = vunpack.c.h.b16 %v305
    %v493 = vunpack.c.l.b16 %v306
    %v494 = vunpack.c.h.b16 %v306
    %v495 = vunpack.c.l.b16 %v307
    %v496 = vunpack.c.h.b16 %v307
    %v497 = vunpack.c.l.b16 %v308
    %v498 = vunpack.c.h.b16 %v308
    %v499 = vunpack.c.l.b16 %v309
    %v500 = vunpack.c.h.b16 %v309
    %v501 = vunpack.c.l.b16 %v310
    %v502 = vunpack.c.h.b16 %v310
    %v503 = vunpack.c.l.b16 %v311
    %v504 = vunpack.c.h.b16 %v311
    %v505 = vunpack.c.l.b16 %v312
    %v506 = vunpack.c.h.b16 %v312
    %v507 = vunpack.c.l.b16 %v313
    %v508 = vunpack.c.h.b16 %v313
    %v509 = vunpack.c.l.b16 %v314
    %v510 = vunpack.c.h.b16 %v314
    %v511 = vunpack.c.l.b16 %v315
    %v512 = vunpack.c.h.b16 %v315
    %v513 = vunpack.c.l.b16 %v316
    %v514 = vunpack.c.h.b16 %v316
    %v515 = vunpack.c.l.b16 %v317
    %v516 = vunpack.c.h.b16 %v317
    %v517 = vunpack.c.l.b16 %v318
    %v518 = vunpack.c.h.b16 %v318
    %v519 = vunpack.c.l.b16 %v319
    %v520 = vunpack.c.h.b16 %v319
    %v521 = vunpack.c.l.b16 %v320
    %v522 = vunpack.c.h.b16 %v320
    %v523 = vunpack.c.l.b16 %v321
    %v524 = vunpack.c.h.b16 %v321
    %v525 = vpack.c.b16 %v399, %v397
    %v526 = vpack.c.b16 %v400, %v398
    %v527 = vpack.c.b16 %v403, %v401
    %v528 = vpack.c.b16 %v404, %v402
    %v529 = vpack.c.b16 %v407, %v405
    %v530 = vpack.c.b16 %v408, %v406
    %v531 = vpack.c.b16 %v411, %v409
    %v532 = vpack.c.b16 %v412, %v410
    %v533 = vpack.c.b16 %v415, %v413
    %v534 = vpack.c.b16 %v416, %v414
    %v535 = vpack.c.b16 %v419, %v417
    %v536 = vpack.c.b16 %v420, %v418
    %v537 = vpack.c.b16 %v423, %v421
    %v538 = vpack.c.b16 %v424, %v422
    %v539 = vpack.c.b16 %v427, %v425
    %v540 = vpack.c.b16 %v428, %v426
    %v541 = vpack.c.b16 %v431, %v429
    %v542 = vpack.c.b16 %v432, %v430
    %v543 = vpack.c.b16 %v435, %v433
    %v544 = vpack.c.b16 %v436, %v434
    %v545 = vpack.c.b16 %v439, %v437
    %v546 = vpack.c.b16 %v440, %v438
    %v547 = vpack.c.b16 %v443, %v441
    %v548 = vpack.c.b16 %v444, %v442
    %v549 = vpack.c.b16 %v447, %v445
    %v550 = vpack.c.b16 %v448, %v446
    %v551 = vpack.c.b16 %v451, %v449
    %v552 = vpack.c.b16 %v452, %v450
    %v553 = vpack.c.b16 %v455, %v453
    %v554 = vpack.c.b16 %v456, %v454
    %v555 = vpack.c.b16 %v459, %v457
    %v556 = vpack.c.b16 %v460, %v458
    %v557 = vpack.c.b16 %v463, %v461
    %v558 = vpack.c.b16 %v464, %v462
    %v559 = vpack.c.b16 %v467, %v465
    %v560 = vpack.c.b16 %v468, %v466
    %v561 = vpack.c.b16 %v471, %v469
    %v562 = vpack.c.b16 %v472, %v470
    %v563 = vpack.c.b16 %v475, %v473
    %v564 = vpack.c.b16 %v476, %v474
    %v565 = vpack.c.b16 %v479, %v477
    %v566 = vpack.c.b16 %v480, %v478
    %v567 = vpack.c.b16 %v483, %v481
    %v568 = vpack.c.b16 %v484, %v482
    %v569 = vpack.c.b16 %v487, %v485
    %v570 = vpack.c.b16 %v488, %v486
    %v571 = vpack.c.b16 %v491, %v489
    %v572 = vpack.c.b16 %v492, %v490
    %v573 = vpack.c.b16 %v495, %v493
    %v574 = vpack.c.b16 %v496, %v494
    %v575 = vpack.c.b16 %v499, %v497
    %v576 = vpack.c.b16 %v500, %v498
    %v577 = vpack.c.b16 %v503, %v501
    %v578 = vpack.c.b16 %v504, %v502
    %v579 = vpack.c.b16 %v507, %v505
    %v580 = vpack.c.b16 %v508, %v506
    %v581 = vpack.c.b16 %v511, %v509
    %v582 = vpack.c.b16 %v512, %v510
    %v583 = vpack.c.b16 %v515, %v513
    %v584 = vpack.c.b16 %v516, %v514
    %v585 = vpack.c.b16 %v519, %v517
    %v586 = vpack.c.b16 %v520, %v518
    %v587 = vpack.c.b16 %v523, %v521
    %v588 = vpack.c.b16 %v524, %v522
    %653 = vmatprep.subr.bf16.mxu0 %v526
    %654 = vmatpush1.bf16.msra.mxu0 %v525
    %655 = vmatprep.subr.bf16.mxu0 %v528
    %656 = vmatpush1.bf16.msra.mxu0 %v527
    %657 = vmatprep.subr.bf16.mxu0 %v530
    %658 = vmatpush1.bf16.msra.mxu0 %v529
    %659 = vmatprep.subr.bf16.mxu0 %v532
    %660 = vmatpush1.bf16.msra.mxu0 %v531
    %661 = vmatprep.subr.bf16.mxu0 %v534
    %662 = vmatpush1.bf16.msra.mxu0 %v533
    %663 = vmatprep.subr.bf16.mxu0 %v536
    %664 = vmatpush1.bf16.msra.mxu0 %v535
    %665 = vmatprep.subr.bf16.mxu0 %v538
    %666 = vmatpush1.bf16.msra.mxu0 %v537
    %667 = vmatprep.subr.bf16.mxu0 %v540
    %668 = vmatpush1.bf16.msra.mxu0 %v539
    %669 = vmatprep.subr.bf16.mxu0 %v542
    %670 = vmatpush1.bf16.msra.mxu0 %v541
    %671 = vmatprep.subr.bf16.mxu0 %v544
    %672 = vmatpush1.bf16.msra.mxu0 %v543
    %673 = vmatprep.subr.bf16.mxu0 %v546
    %674 = vmatpush1.bf16.msra.mxu0 %v545
    %675 = vmatprep.subr.bf16.mxu0 %v548
    %676 = vmatpush1.bf16.msra.mxu0 %v547
    %677 = vmatprep.subr.bf16.mxu0 %v550
    %678 = vmatpush1.bf16.msra.mxu0 %v549
    %679 = vmatprep.subr.bf16.mxu0 %v552
    %680 = vmatpush1.bf16.msra.mxu0 %v551
    %681 = vmatprep.subr.bf16.mxu0 %v554
    %682 = vmatpush1.bf16.msra.mxu0 %v553
    %683 = vmatprep.subr.bf16.mxu0 %v556
    %684 = vmatpush1.bf16.msra.mxu0 %v555
    %685 = vmatprep.mubr.bf16.mxu0 %v255
    %686 = vmatmul.mubr.bf16.gmra.mrb[0].mxu0 %v254
    %v687 = vpop.f32.mrb[0].mxu0
    %v688 = vadd.f32 %v326, %v687
    %v689 = vpop.f32.mrb[0].mxu0
    %v690 = vadd.f32 %v330, %v689
    %v691 = vpop.f32.mrb[0].mxu0
    %v692 = vadd.f32 %v326, %v691
    %v693 = vpop.f32.mrb[0].mxu0
    %v694 = vadd.f32 %v330, %v693
    %695 = vdwg.mxu0
    %696 = vmatprep.subr.bf16.mxu0 %v558
    %697 = vmatpush1.bf16.msra.mxu0 %v557
    %698 = vmatprep.subr.bf16.mxu0 %v560
    %699 = vmatpush1.bf16.msra.mxu0 %v559
    %700 = vmatprep.subr.bf16.mxu0 %v562
    %701 = vmatpush1.bf16.msra.mxu0 %v561
    %702 = vmatprep.subr.bf16.mxu0 %v564
    %703 = vmatpush1.bf16.msra.mxu0 %v563
    %704 = vmatprep.subr.bf16.mxu0 %v566
    %705 = vmatpush1.bf16.msra.mxu0 %v565
    %706 = vmatprep.subr.bf16.mxu0 %v568
    %707 = vmatpush1.bf16.msra.mxu0 %v567
    %708 = vmatprep.subr.bf16.mxu0 %v570
    %709 = vmatpush1.bf16.msra.mxu0 %v569
    %710 = vmatprep.subr.bf16.mxu0 %v572
    %711 = vmatpush1.bf16.msra.mxu0 %v571
    %712 = vmatprep.subr.bf16.mxu0 %v574
    %713 = vmatpush1.bf16.msra.mxu0 %v573
    %714 = vmatprep.subr.bf16.mxu0 %v576
    %715 = vmatpush1.bf16.msra.mxu0 %v575
    %716 = vmatprep.subr.bf16.mxu0 %v578
    %717 = vmatpush1.bf16.msra.mxu0 %v577
    %718 = vmatprep.subr.bf16.mxu0 %v580
    %719 = vmatpush1.bf16.msra.mxu0 %v579
    %720 = vmatprep.subr.bf16.mxu0 %v582
    %721 = vmatpush1.bf16.msra.mxu0 %v581
    %722 = vmatprep.subr.bf16.mxu0 %v584
    %723 = vmatpush1.bf16.msra.mxu0 %v583
    %724 = vmatprep.subr.bf16.mxu0 %v586
    %725 = vmatpush1.bf16.msra.mxu0 %v585
    %726 = vmatprep.subr.bf16.mxu0 %v588
    %727 = vmatpush1.bf16.msra.mxu0 %v587
    %728 = vmatprep.mubr.bf16.mxu0 %v257
    %729 = vmatmul.mubr.bf16.gmra.mrb[0].mxu0 %v256
    %v730 = vpop.f32.mrb[0].mxu0
    %v731 = vadd.f32 %v688, %v730
    %v732 = vpop.f32.mrb[0].mxu0
    %v733 = vadd.f32 %v690, %v732
    %v734 = vpop.f32.mrb[0].mxu0
    %v735 = vadd.f32 %v692, %v734
    %v736 = vpop.f32.mrb[0].mxu0
    %v737 = vadd.f32 %v694, %v736
    %738 = vdwg.mxu0
    %v739 = vmax.f32 %v731, 0.0
    %v740 = vmax.f32 %v733, 0.0
    %v741 = vmax.f32 %v735, 0.0
    %v742 = vmax.f32 %v737, 0.0
    %v743 = vpack.c.bf16 %v741, %v739
    %v744 = vpack.c.bf16 %v742, %v740
    %v745 = vld [vmem:[#allocation8] sm:$0xf]
    %v746 = vld [vmem:[#allocation8 + $0x4] sm:$0xf]
    %v747 = vld [vmem:[#allocation8 + $0x8] sm:$0xf]
    %v748 = vld [vmem:[#allocation8 + $0xc] sm:$0xf]
    %v749 = vld [vmem:[#allocation8 + $0x10] sm:$0xf]
    %v750 = vld [vmem:[#allocation8 + $0x14] sm:$0xf]
    %v751 = vld [vmem:[#allocation8 + $0x18] sm:$0xf]
    %v752 = vld [vmem:[#allocation8 + $0x1c] sm:$0xf]
    %v753 = vld [vmem:[#allocation8 + $0x20] sm:$0xf]
    %v754 = vld [vmem:[#allocation8 + $0x24] sm:$0xf]
    %v755 = vld [vmem:[#allocation8 + $0x28] sm:$0xf]
    %v756 = vld [vmem:[#allocation8 + $0x2c] sm:$0xf]
    %v757 = vld [vmem:[#allocation8 + $0x30] sm:$0xf]
    %v758 = vld [vmem:[#allocation8 + $0x34] sm:$0xf]
    %v759 = vld [vmem:[#allocation8 + $0x38] sm:$0xf]
    %v760 = vld [vmem:[#allocation8 + $0x3c] sm:$0xf]
    %v761 = vld [vmem:[#allocation8 + $0x40] sm:$0xf]
    %v762 = vld [vmem:[#allocation8 + $0x44] sm:$0xf]
    %v763 = vld [vmem:[#allocation8 + $0x48] sm:$0xf]
    %v764 = vld [vmem:[#allocation8 + $0x4c] sm:$0xf]
    %v765 = vld [vmem:[#allocation8 + $0x50] sm:$0xf]
    %v766 = vld [vmem:[#allocation8 + $0x54] sm:$0xf]
    %v767 = vld [vmem:[#allocation8 + $0x58] sm:$0xf]
    %v768 = vld [vmem:[#allocation8 + $0x5c] sm:$0xf]
    %v769 = vld [vmem:[#allocation8 + $0x60] sm:$0xf]
    %v770 = vld [vmem:[#allocation8 + $0x64] sm:$0xf]
    %v771 = vld [vmem:[#allocation8 + $0x68] sm:$0xf]
    %v772 = vld [vmem:[#allocation8 + $0x6c] sm:$0xf]
    %v773 = vld [vmem:[#allocation8 + $0x70] sm:$0xf]
    %v774 = vld [vmem:[#allocation8 + $0x74] sm:$0xf]
    %v775 = vld [vmem:[#allocation8 + $0x78] sm:$0xf]
    %v776 = vld [vmem:[#allocation8 + $0x7c] sm:$0xf]
    %v778 = vlaneseq
    %v779 = vshrl.u32 %v778, 7
    %v780 = vsub.s32 0, %v779
    %v781 = vrot.slane %v81, %v780
    %v815 = vunpack.c.l.b16 %v745
    %v816 = vunpack.c.l.b16 %v746
    %v817 = vunpack.c.l.b16 %v747
    %v818 = vunpack.c.l.b16 %v748
    %v819 = vunpack.c.l.b16 %v749
    %v820 = vunpack.c.l.b16 %v750
    %v821 = vunpack.c.l.b16 %v751
    %v822 = vunpack.c.l.b16 %v752
    %v823 = vunpack.c.l.b16 %v753
    %v824 = vunpack.c.l.b16 %v754
    %v825 = vunpack.c.l.b16 %v755
    %v826 = vunpack.c.l.b16 %v756
    %v827 = vunpack.c.l.b16 %v757
    %v828 = vunpack.c.l.b16 %v758
    %v829 = vunpack.c.l.b16 %v759
    %v830 = vunpack.c.l.b16 %v760
    %v831 = vunpack.c.l.b16 %v761
    %v832 = vunpack.c.l.b16 %v762
    %v833 = vunpack.c.l.b16 %v763
    %v834 = vunpack.c.l.b16 %v764
    %v835 = vunpack.c.l.b16 %v765
    %v836 = vunpack.c.l.b16 %v766
    %v837 = vunpack.c.l.b16 %v767
    %v838 = vunpack.c.l.b16 %v768
    %v839 = vunpack.c.l.b16 %v769
    %v840 = vunpack.c.l.b16 %v770
    %v841 = vunpack.c.l.b16 %v771
    %v842 = vunpack.c.l.b16 %v772
    %v843 = vunpack.c.l.b16 %v773
    %v844 = vunpack.c.l.b16 %v774
    %v845 = vunpack.c.l.b16 %v775
    %v846 = vunpack.c.l.b16 %v776
    %v847 = vpack.c.b16 %v816, %v815
    %v848 = vpack.c.b16 %v818, %v817
    %v849 = vpack.c.b16 %v820, %v819
    %v850 = vpack.c.b16 %v822, %v821
    %v851 = vpack.c.b16 %v824, %v823
    %v852 = vpack.c.b16 %v826, %v825
    %v853 = vpack.c.b16 %v828, %v827
    %v854 = vpack.c.b16 %v830, %v829
    %v855 = vpack.c.b16 %v832, %v831
    %v856 = vpack.c.b16 %v834, %v833
    %v857 = vpack.c.b16 %v836, %v835
    %v858 = vpack.c.b16 %v838, %v837
    %v859 = vpack.c.b16 %v840, %v839
    %v860 = vpack.c.b16 %v842, %v841
    %v861 = vpack.c.b16 %v844, %v843
    %v862 = vpack.c.b16 %v846, %v845
    %879 = vmatprep.subr.bf16.mxu0 0
    %880 = vmatpush1.bf16.msra.mxu0 %v847
    %881 = vmatprep.subr.bf16.mxu0 0
    %882 = vmatpush1.bf16.msra.mxu0 %v848
    %883 = vmatprep.subr.bf16.mxu0 0
    %884 = vmatpush1.bf16.msra.mxu0 %v849
    %885 = vmatprep.subr.bf16.mxu0 0
    %886 = vmatpush1.bf16.msra.mxu0 %v850
    %887 = vmatprep.subr.bf16.mxu0 0
    %888 = vmatpush1.bf16.msra.mxu0 %v851
    %889 = vmatprep.subr.bf16.mxu0 0
    %890 = vmatpush1.bf16.msra.mxu0 %v852
    %891 = vmatprep.subr.bf16.mxu0 0
    %892 = vmatpush1.bf16.msra.mxu0 %v853
    %893 = vmatprep.subr.bf16.mxu0 0
    %894 = vmatpush1.bf16.msra.mxu0 %v854
    %895 = vmatprep.subr.bf16.mxu0 0
    %896 = vmatpush1.bf16.msra.mxu0 %v855
    %897 = vmatprep.subr.bf16.mxu0 0
    %898 = vmatpush1.bf16.msra.mxu0 %v856
    %899 = vmatprep.subr.bf16.mxu0 0
    %900 = vmatpush1.bf16.msra.mxu0 %v857
    %901 = vmatprep.subr.bf16.mxu0 0
    %902 = vmatpush1.bf16.msra.mxu0 %v858
    %903 = vmatprep.subr.bf16.mxu0 0
    %904 = vmatpush1.bf16.msra.mxu0 %v859
    %905 = vmatprep.subr.bf16.mxu0 0
    %906 = vmatpush1.bf16.msra.mxu0 %v860
    %907 = vmatprep.subr.bf16.mxu0 0
    %908 = vmatpush1.bf16.msra.mxu0 %v861
    %909 = vmatprep.subr.bf16.mxu0 0
    %910 = vmatpush1.bf16.msra.mxu0 %v862
    %911 = vmatprep.mubr.bf16.mxu0 %v744
    %912 = vmatmul.mubr.bf16.gmra.mrb[0].mxu0 %v743
    %v913 = vpop.f32.mrb[0].mxu0
    %v914 = vadd.f32 %v781, %v913
    %v915 = vpop.f32.mrb[0].mxu0
    %v916 = vpop.f32.mrb[0].mxu0
    %v917 = vadd.f32 %v781, %v916
    %v918 = vpop.f32.mrb[0].mxu0
    %919 = vdwg.mxu0
    %v920 = vsub.f32 0.0, %v914
    %v921 = vsub.f32 0.0, %v917
    %v922 = vmul.f32 %v920, 1.442695
    %v923 = vpow.pop %v922
    %v924 = vmul.f32 %v921, 1.442695
    %v925 = vpow.pop %v924
    %v926 = vadd.f32 %v923, 1.0
    %v927 = vadd.f32 %v925, 1.0
    %v928 = vrcp.pop %v926
    %v929 = vrcp.pop %v927
    %v930 = vlaneseq
    %v931 = vand.u32 %v930, 127
    %vm932 = vcmp.lt.s32.totalorder %v931, 4
    %v933 = vsel %vm932, 1, 0
    %vm934 = vcmp.eq.s32.totalorder %v933, 1
    %v935 = vsel %vm934, %v928, 0.0
    %v936 = vsel %vm934, %v929, 0.0
    %937 = vst [vmem:[#allocation10] sm:$0xff] %v935
    %938 = vst [vmem:[#allocation10 + $0x8] sm:$0xff] %v936
    // Predicated region
    $region38: #{tpu_custom_call.1} parent=1 // pred_check
      _
    $region39: #{tpu_custom_call.1} parent=1 // pred_check_branch
      %940 = sbr.rel (0) target = $region41
    $region40: #{tpu_custom_call.1} parent=1 // pred_region
      %s942 = ssub.s32 256, 256
      %943 = vsyncadd [#allocation4], %s942
      %s944 = sshll.u32 [#allocation10], 4
      %s945 = int_to_ptr.vmem [resolvable:$true] %s944
      %950 = dma.vmem_to_hbm [thread:$0]  %s945, 256, %s5, [#allocation4], 128, 128, 8
    $region41: #{tpu_custom_call.1} parent=1 // pred_fallthru
      _
    // Predicated region
    $region42: #{tpu_custom_call.1} parent=1 // pred_check
      _
    $region43: #{tpu_custom_call.1} parent=1 // pred_check_branch
      %952 = sbr.rel (0) target = $region45
    $region44: #{tpu_custom_call.1} parent=1 // pred_region
      %953 = dma.done [#allocation4], 256
    $region45: #{tpu_custom_call.1} parent=1 // pred_fallthru
      _
    %954 = vsyncpa [#allocation3], 1
    %955 = vsyncpa [#allocation6], 1
    %956 = vsyncpa [#allocation9], 1
    %957 = vsyncpa [#allocation4], 1

</llo_original>
